<compile_context>
chip_gen: v7x
topology: tpu7x:2x2x1
jax: 0.10.0
libtpu: 0.0.40
codegen_flags: <defaults>
</compile_context>

<pallas_src>
import jax
import jax.numpy as jnp
from jax.experimental import pallas as pl
from jax.experimental.pallas import tpu as pltpu

_NEG_BIG = -1e30


def _round_up(x, m):
    return ((x + m - 1) // m) * m


def _sublane(dtype):
    # 8 rows per sublane-tile for 32-bit, 16 for bf16, 32 for int8/fp8.
    return max(8, 32 // jnp.dtype(dtype).itemsize)


def _default_vmem_limit_bytes():
    try:
        cap = int(pltpu.get_tpu_info().vmem_capacity_bytes)
        # ~3/4 of physical VMEM, capped: v5e/v6e -> 96 MiB, v7x -> 48 MiB.
        return min((cap * 3) // 4, 112 * 1024 * 1024)
    except Exception:  # pragma: no cover - conservative fallback off-TPU
        return 64 * 1024 * 1024


def _fit_tiles(tm, tv, d_model, op_itemsize, sub, vmem_limit_bytes):
    """Shrink (tm, tv) until the double-buffered working set fits the budget."""
    budget = int(vmem_limit_bytes * 0.85)

    def est(tm_, tv_):
        x_blk = tm_ * d_model * op_itemsize
        w_blk = d_model * tv_ * op_itemsize
        b_blk = tv_ * 4
        o_blk = tm_ * tv_ * 4
        return 2 * (x_blk + w_blk + b_blk + o_blk) + 4 * tm_ * 4

    while est(tm, tv) > budget and tv > 256:
        tv = max(128, _round_up(tv // 2, 128))
    while est(tm, tv) > budget and tm > 2 * sub:
        tm = max(sub, _round_up(tm // 2, sub))
    return tm, tv


def _logits_lse_kernel(x_ref, w_ref, b_ref, logits_ref, lse_ref, m_ref, l_ref):
    # x_ref: (TM, D), w_ref: (D, TV), b_ref: (1, TV) f32,
    # logits_ref: (TM, TV) f32, lse_ref: (TM, 1) f32,
    # m_ref / l_ref: (TM, 1) f32 scratch (running max / rescaled sum-exp).
    j = pl.program_id(1)

    # Single matmul per (row-tile, vocab-tile): MXU accumulates in f32; bias
    # add and all softmax math stay f32 even for bf16 operands.
    logits = jnp.dot(
        x_ref[...], w_ref[...], preferred_element_type=jnp.float32
    ) + b_ref[...]
    logits_ref[...] = logits  # un-normalized logits, normalized in pass 2

    @pl.when(j == 0)
    def _init():
        m_ref[...] = jnp.full(m_ref.shape, -jnp.inf, dtype=jnp.float32)
        l_ref[...] = jnp.zeros(l_ref.shape, dtype=jnp.float32)

    m_prev = m_ref[...]
    m_new = jnp.maximum(m_prev, jnp.max(logits, axis=-1, keepdims=True))
    l_ref[...] = (l_ref[...] * jnp.exp(m_prev - m_new)
                  + jnp.sum(jnp.exp(logits - m_new), axis=-1, keepdims=True))
    m_ref[...] = m_new

    @pl.when(j == pl.num_programs(1) - 1)
    def _finalize():
        lse_ref[...] = m_ref[...] + jnp.log(l_ref[...])


def _normalize_kernel(logits_ref, lse_ref, o_ref):
    # out = logits - lse (f32 math, cast on store).
    o_ref[...] = (logits_ref[...] - lse_ref[...]).astype(o_ref.dtype)


def make_output_generator(w_t, b, *, tm=512, tv=2048, compute_dtype=None,
                          vmem_limit_bytes=None, interpret=False):
    """Prepare parameters once and return apply(x) = log_softmax(x @ w_t + b).

    w_t: (d_model, vocab) -- transpose of the PyTorch nn.Linear weight.
    b:   (vocab,)
    compute_dtype: optional dtype (e.g. jnp.bfloat16) for the matmul operands.
    """
    d_model, vocab = w_t.shape
    op_dtype = (jnp.dtype(compute_dtype) if compute_dtype is not None
                else jnp.dtype(w_t.dtype))
    sub = _sublane(op_dtype)

    if vmem_limit_bytes is None:
        vmem_limit_bytes = _default_vmem_limit_bytes()

    tv_eff = _round_up(min(tv, _round_up(vocab, 128)), 128)
    tm_max = _round_up(max(tm, sub), sub)
    tm_max, tv_eff = _fit_tiles(tm_max, tv_eff, d_model, op_dtype.itemsize,
                                sub, vmem_limit_bytes)

    Vp = _round_up(vocab, tv_eff)
    n_voc = Vp // tv_eff

    # Hoisted (one-time) weight cast + vocab pad. Padded columns get a -1e30
    # bias so they contribute nothing to the logsumexp.
    w2 = w_t.astype(op_dtype)
    b2 = b.astype(jnp.float32).reshape(1, vocab)
    if Vp != vocab:
        w2 = jnp.pad(w2, ((0, 0), (0, Vp - vocab)))
        b2 = jnp.pad(b2, ((0, 0), (0, Vp - vocab)), constant_values=_NEG_BIG)

    def _apply(x):
        lead_shape = x.shape[:-1]
        out_dtype = x.dtype
        x2 = x.reshape(-1, d_model)
        M = x2.shape[0]

        tm_eff = min(tm_max, _round_up(M, sub))
        Mp = _round_up(M, tm_eff)
        if Mp != M:
            x2 = jnp.pad(x2, ((0, Mp - M), (0, 0)))
        x2 = x2.astype(op_dtype)

        n_row = Mp // tm_eff
        grid = (n_row, n_voc)

        cost1 = pl.CostEstimate(
            flops=int(2 * Mp * d_model * Vp),          # single matmul pass
            transcendentals=int(Mp * Vp),              # one exp per logit
            bytes_accessed=int(
                x2.size * x2.dtype.itemsize
                + n_row * w2.size * w2.dtype.itemsize  # weight once per row tile
                + n_row * b2.size * 4
                + Mp * Vp * 4                          # un-normalized logits out
                + Mp * 4),
        )

        logits, lse = pl.pallas_call(
            _logits_lse_kernel,
            out_shape=(jax.ShapeDtypeStruct((Mp, Vp), jnp.float32),
                       jax.ShapeDtypeStruct((Mp, 1), jnp.float32)),
            grid_spec=pltpu.PrefetchScalarGridSpec(
                num_scalar_prefetch=0,
                grid=grid,
                in_specs=[
                    pl.BlockSpec((tm_eff, d_model), lambda i, j: (i, 0)),
                    pl.BlockSpec((d_model, tv_eff), lambda i, j: (0, j)),
                    pl.BlockSpec((1, tv_eff), lambda i, j: (0, j)),
                ],
                out_specs=[
                    pl.BlockSpec((tm_eff, tv_eff), lambda i, j: (i, j)),
                    pl.BlockSpec((tm_eff, 1), lambda i, j: (i, 0)),
                ],
                scratch_shapes=[
                    pltpu.VMEM((tm_eff, 1), jnp.float32),   # running max
                    pltpu.VMEM((tm_eff, 1), jnp.float32),   # running sum-exp
                ],
            ),
            compiler_params=pltpu.CompilerParams(
                dimension_semantics=("parallel", "arbitrary"),
                vmem_limit_bytes=vmem_limit_bytes,
            ),
            cost_estimate=cost1,
            interpret=interpret,
        )(x2, w2, b2)

        # Pass 2: normalize. Alias the logits buffer in place when dtypes match.
        alias = ({0: 0} if jnp.dtype(out_dtype) == jnp.dtype(jnp.float32)
                 else {})
        out = pl.pallas_call(
            _normalize_kernel,
            out_shape=jax.ShapeDtypeStruct((Mp, Vp), out_dtype),
            grid_spec=pltpu.PrefetchScalarGridSpec(
                num_scalar_prefetch=0,
                grid=grid,
                in_specs=[
                    pl.BlockSpec((tm_eff, tv_eff), lambda i, j: (i, j)),
                    pl.BlockSpec((tm_eff, 1), lambda i, j: (i, 0)),
                ],
                out_specs=pl.BlockSpec((tm_eff, tv_eff), lambda i, j: (i, j)),
            ),
            compiler_params=pltpu.CompilerParams(
                dimension_semantics=("parallel", "parallel"),
                vmem_limit_bytes=vmem_limit_bytes,
            ),
            input_output_aliases=alias,
            interpret=interpret,
        )(logits, lse)

        out = out[:M, :vocab]
        return out.reshape(*lead_shape, vocab)

    return jax.jit(_apply)


def output_generator(x, w_t, b, **kwargs):
    """One-shot convenience wrapper. For repeated calls with the same weights
    prefer make_output_generator (the weight pad/cast is hoisted there)."""
    return make_output_generator(w_t, b, **kwargs)(x)


def reference(x, w_t, b):
    logits = jnp.einsum("...d,dv->...v", x, w_t) + b
    return jax.nn.log_softmax(logits, axis=-1)


def _make_inputs(key, batch, seq, d_model, vocab):
    kx, kw, kb = jax.random.split(key, 3)
    x = jax.random.normal(kx, (batch, seq, d_model), dtype=jnp.float32)
    # nn.Linear-style init: U(-1/sqrt(d_model), 1/sqrt(d_model)); PyTorch
    # weight is (vocab, d_model), we store its transpose (d_model, vocab).
    bound = 1.0 / (d_model ** 0.5)
    w_t = jax.random.uniform(kw, (d_model, vocab), minval=-bound,
                             maxval=bound, dtype=jnp.float32)
    b = jax.random.uniform(kb, (vocab,), minval=-bound, maxval=bound,
                           dtype=jnp.float32)
    return x, w_t, b


if __name__ == "__main__":
    key = jax.random.PRNGKey(0)
    k1, k2 = jax.random.split(key)

    # Main (small) shapes: batch=2, seq=64, d_model=64, vocab=512.
    x, w_t, b = _make_inputs(k1, batch=2, seq=64, d_model=64, vocab=512)
    ref = reference(x, w_t, b)

    # 1) Force a multi-tile grid (4 row tiles x 4 vocab tiles), f32 operands.
    gen_small = make_output_generator(w_t, b, tm=32, tv=128)
    out = jax.block_until_ready(gen_small(x))
    assert out.shape == ref.shape
    assert jnp.allclose(out, ref, atol=2e-4, rtol=2e-4)

    # 2) Default tile parameters (auto-shrunk to the problem size).
    out = jax.block_until_ready(make_output_generator(w_t, b)(x))
    assert jnp.allclose(out, ref, atol=2e-4, rtol=2e-4)

    # 3) bf16 matmul operands, f32 accumulation / softmax math.
    gen_bf16 = make_output_generator(w_t, b, tm=32, tv=128,
                                     compute_dtype=jnp.bfloat16)
    out_bf16 = jax.block_until_ready(gen_bf16(x))
    assert jnp.allclose(out_bf16, ref, atol=5e-2, rtol=5e-2)

    # 4) Ragged shapes (row and vocab padding paths).
    xr, wr, br = _make_inputs(k2, batch=2, seq=7, d_model=48, vocab=200)
    out_r = jax.block_until_ready(make_output_generator(wr, br, tm=8, tv=128)(xr))
    ref_r = reference(xr, wr, br)
    assert out_r.shape == ref_r.shape
    assert jnp.allclose(out_r, ref_r, atol=2e-4, rtol=2e-4)

    print("KERNEL_OK")
</pallas_src>

<mosaic_0001>
module attributes {stable_mosaic.version = 11 : i64} {
  func.func @_normalize_kernel(%arg0: i32, %arg1: i32, %arg2: memref<32x128xf32, #tpu.memory_space<vmem>>, %arg3: memref<32x1xf32, #tpu.memory_space<vmem>>, %arg4: memref<32x128xf32, #tpu.memory_space<vmem>>) attributes {dimension_semantics = [#tpu.dimension_semantics<parallel>, #tpu.dimension_semantics<parallel>], iteration_bounds = array<i64: 4, 4>, scalar_prefetch = 0 : i64, scratch_operands = 0 : i64, tpu.core_type = #tpu.core_type<tc>, window_params = [{transform_indices = @transform_0, window_bounds = array<i64: 32, 128>}, {transform_indices = @transform_1, window_bounds = array<i64: 32, 1>}, {transform_indices = @transform_2, window_bounds = array<i64: 32, 128>}]} {
    %c0 = arith.constant 0 : index
    %c0_0 = arith.constant 0 : index
    %0 = vector.load %arg2[%c0, %c0_0] : memref<32x128xf32, #tpu.memory_space<vmem>>, vector<32x128xf32>
    %c0_1 = arith.constant 0 : index
    %c0_2 = arith.constant 0 : index
    %1 = vector.load %arg3[%c0_1, %c0_2] : memref<32x1xf32, #tpu.memory_space<vmem>>, vector<32x1xf32>
    %2 = vector.broadcast %1 : vector<32x1xf32> to vector<32x128xf32>
    %3 = arith.subf %0, %2 : vector<32x128xf32>
    %c0_3 = arith.constant 0 : index
    %c0_4 = arith.constant 0 : index
    %4 = vector.load %arg4[%c0_3, %c0_4] : memref<32x128xf32, #tpu.memory_space<vmem>>, vector<32x128xf32>
    tpu.vector_store %arg4[%c0_3, %c0_4], %3 {strides = array<i32>} : memref<32x128xf32, #tpu.memory_space<vmem>>, vector<32x128xf32>,
    return
  }
  func.func @transform_0(%arg0: i32, %arg1: i32) -> (i32, i32) {
    %c0_i32 = arith.constant 0 : i32
    return %arg0, %arg1 : i32, i32
  }
  func.func @transform_1(%arg0: i32, %arg1: i32) -> (i32, i32) {
    %c0_i32 = arith.constant 0 : i32
    %c0_i32_0 = arith.constant 0 : i32
    return %arg0, %c0_i32 : i32, i32
  }
  func.func @transform_2(%arg0: i32, %arg1: i32) -> (i32, i32) {
    %c0_i32 = arith.constant 0 : i32
    return %arg0, %arg1 : i32, i32
  }
}

module attributes {stable_mosaic.version = 11 : i64} {
  func.func @_logits_lse_kernel(%arg0: i32, %arg1: i32, %arg2: memref<32x64xf32, #tpu.memory_space<vmem>>, %arg3: memref<64x128xf32, #tpu.memory_space<vmem>>, %arg4: memref<1x128xf32, #tpu.memory_space<vmem>>, %arg5: memref<32x128xf32, #tpu.memory_space<vmem>>, %arg6: memref<32x1xf32, #tpu.memory_space<vmem>>, %arg7: memref<32x1xf32, #tpu.memory_space<vmem>>, %arg8: memref<32x1xf32, #tpu.memory_space<vmem>>) attributes {dimension_semantics = [#tpu.dimension_semantics<parallel>, #tpu.dimension_semantics<arbitrary>], iteration_bounds = array<i64: 4, 4>, scalar_prefetch = 0 : i64, scratch_operands = 2 : i64, tpu.core_type = #tpu.core_type<tc>, window_params = [{transform_indices = @transform_0, window_bounds = array<i64: 32, 64>}, {transform_indices = @transform_1, window_bounds = array<i64: 64, 128>}, {transform_indices = @transform_2, window_bounds = array<i64: 1, 128>}, {transform_indices = @transform_3, window_bounds = array<i64: 32, 128>}, {transform_indices = @transform_4, window_bounds = array<i64: 32, 1>}]} {
    %c0 = arith.constant 0 : index
    %c0_0 = arith.constant 0 : index
    %0 = vector.load %arg2[%c0, %c0_0] : memref<32x64xf32, #tpu.memory_space<vmem>>, vector<32x64xf32>
    %c0_1 = arith.constant 0 : index
    %c0_2 = arith.constant 0 : index
    %1 = vector.load %arg3[%c0_1, %c0_2] : memref<64x128xf32, #tpu.memory_space<vmem>>, vector<64x128xf32>
    %cst = arith.constant dense<0.000000e+00> : vector<32x128xf32>
    %2 = tpu.matmul %0, %1, %cst {dimension_numbers = #tpu.dot_dimension_numbers<[1], [0], [0], [1], [0, 0, 1, 1], [], []>} : vector<32x64xf32>, vector<64x128xf32>, vector<32x128xf32> -> vector<32x128xf32>
    %c0_3 = arith.constant 0 : index
    %c0_4 = arith.constant 0 : index
    %3 = vector.load %arg4[%c0_3, %c0_4] : memref<1x128xf32, #tpu.memory_space<vmem>>, vector<1x128xf32>
    %4 = vector.broadcast %3 : vector<1x128xf32> to vector<32x128xf32>
    %5 = arith.addf %2, %4 : vector<32x128xf32>
    %c0_5 = arith.constant 0 : index
    %c0_6 = arith.constant 0 : index
    %6 = vector.load %arg5[%c0_5, %c0_6] : memref<32x128xf32, #tpu.memory_space<vmem>>, vector<32x128xf32>
    tpu.vector_store %arg5[%c0_5, %c0_6], %5 {strides = array<i32>} : memref<32x128xf32, #tpu.memory_space<vmem>>, vector<32x128xf32>,
    %c0_i32 = arith.constant 0 : i32
    %7 = arith.cmpi eq, %arg1, %c0_i32 : i32
    %8 = arith.extui %7 : i1 to i32
    %c0_i32_7 = arith.constant 0 : i32
    %9 = arith.cmpi ne, %8, %c0_i32_7 : i32
    scf.if %9 {
      %cst_19 = arith.constant 0xFF800000 : f32
      %29 = vector.broadcast %cst_19 : f32 to vector<32x1xf32>
      %c0_20 = arith.constant 0 : index
      %c0_21 = arith.constant 0 : index
      %30 = vector.load %arg7[%c0_20, %c0_21] : memref<32x1xf32, #tpu.memory_space<vmem>>, vector<32x1xf32>
      tpu.vector_store %arg7[%c0_20, %c0_21], %29 {strides = array<i32>} : memref<32x1xf32, #tpu.memory_space<vmem>>, vector<32x1xf32>,
      %cst_22 = arith.constant 0.000000e+00 : f32
      %31 = vector.broadcast %cst_22 : f32 to vector<32x1xf32>
      %c0_23 = arith.constant 0 : index
      %c0_24 = arith.constant 0 : index
      %32 = vector.load %arg8[%c0_23, %c0_24] : memref<32x1xf32, #tpu.memory_space<vmem>>, vector<32x1xf32>
      tpu.vector_store %arg8[%c0_23, %c0_24], %31 {strides = array<i32>} : memref<32x1xf32, #tpu.memory_space<vmem>>, vector<32x1xf32>,
    } else {
    }
    %c0_8 = arith.constant 0 : index
    %c0_9 = arith.constant 0 : index
    %10 = vector.load %arg7[%c0_8, %c0_9] : memref<32x1xf32, #tpu.memory_space<vmem>>, vector<32x1xf32>
    %cst_10 = arith.constant dense<0xFF800000> : vector<32xf32>
    %11 = vector.multi_reduction <maximumf>, %5, %cst_10 [1] : vector<32x128xf32> to vector<32xf32>
    %12 = vector.shape_cast %11 : vector<32xf32> to vector<32x1xf32>
    %13 = arith.maximumf %10, %12 : vector<32x1xf32>
    %c0_11 = arith.constant 0 : index
    %c0_12 = arith.constant 0 : index
    %14 = vector.load %arg8[%c0_11, %c0_12] : memref<32x1xf32, #tpu.memory_space<vmem>>, vector<32x1xf32>
    %15 = arith.subf %10, %13 : vector<32x1xf32>
    %16 = math.exp %15 : vector<32x1xf32>
    %17 = arith.mulf %14, %16 : vector<32x1xf32>
    %18 = vector.broadcast %13 : vector<32x1xf32> to vector<32x128xf32>
    %19 = arith.subf %5, %18 : vector<32x128xf32>
    %20 = math.exp %19 : vector<32x128xf32>
    %cst_13 = arith.constant dense<0.000000e+00> : vector<32xf32>
    %21 = vector.multi_reduction <add>, %20, %cst_13 [1] : vector<32x128xf32> to vector<32xf32>
    %22 = vector.shape_cast %21 : vector<32xf32> to vector<32x1xf32>
    %23 = arith.addf %17, %22 : vector<32x1xf32>
    %c0_14 = arith.constant 0 : index
    %c0_15 = arith.constant 0 : index
    %24 = vector.load %arg8[%c0_14, %c0_15] : memref<32x1xf32, #tpu.memory_space<vmem>>, vector<32x1xf32>
    tpu.vector_store %arg8[%c0_14, %c0_15], %23 {strides = array<i32>} : memref<32x1xf32, #tpu.memory_space<vmem>>, vector<32x1xf32>,
    %c0_16 = arith.constant 0 : index
    %c0_17 = arith.constant 0 : index
    %25 = vector.load %arg7[%c0_16, %c0_17] : memref<32x1xf32, #tpu.memory_space<vmem>>, vector<32x1xf32>
    tpu.vector_store %arg7[%c0_16, %c0_17], %13 {strides = array<i32>} : memref<32x1xf32, #tpu.memory_space<vmem>>, vector<32x1xf32>,
    %c3_i32 = arith.constant 3 : i32
    %26 = arith.cmpi eq, %arg1, %c3_i32 : i32
    %27 = arith.extui %26 : i1 to i32
    %c0_i32_18 = arith.constant 0 : i32
    %28 = arith.cmpi ne, %27, %c0_i32_18 : i32
    scf.if %28 {
      %c0_19 = arith.constant 0 : index
      %c0_20 = arith.constant 0 : index
      %29 = vector.load %arg7[%c0_19, %c0_20] : memref<32x1xf32, #tpu.memory_space<vmem>>, vector<32x1xf32>
      %c0_21 = arith.constant 0 : index
      %c0_22 = arith.constant 0 : index
      %30 = vector.load %arg8[%c0_21, %c0_22] : memref<32x1xf32, #tpu.memory_space<vmem>>, vector<32x1xf32>
      %31 = math.log %30 : vector<32x1xf32>
      %32 = arith.addf %29, %31 : vector<32x1xf32>
      %c0_23 = arith.constant 0 : index
      %c0_24 = arith.constant 0 : index
      %33 = vector.load %arg6[%c0_23, %c0_24] : memref<32x1xf32, #tpu.memory_space<vmem>>, vector<32x1xf32>
      tpu.vector_store %arg6[%c0_23, %c0_24], %32 {strides = array<i32>} : memref<32x1xf32, #tpu.memory_space<vmem>>, vector<32x1xf32>,
    } else {
    }
    return
  }
  func.func @transform_0(%arg0: i32, %arg1: i32) -> (i32, i32) {
    %c0_i32 = arith.constant 0 : i32
    %c0_i32_0 = arith.constant 0 : i32
    return %arg0, %c0_i32 : i32, i32
  }
  func.func @transform_1(%arg0: i32, %arg1: i32) -> (i32, i32) {
    %c0_i32 = arith.constant 0 : i32
    %c0_i32_0 = arith.constant 0 : i32
    return %c0_i32, %arg1 : i32, i32
  }
  func.func @transform_2(%arg0: i32, %arg1: i32) -> (i32, i32) {
    %c0_i32 = arith.constant 0 : i32
    %c0_i32_0 = arith.constant 0 : i32
    return %c0_i32, %arg1 : i32, i32
  }
  func.func @transform_3(%arg0: i32, %arg1: i32) -> (i32, i32) {
    %c0_i32 = arith.constant 0 : i32
    return %arg0, %arg1 : i32, i32
  }
  func.func @transform_4(%arg0: i32, %arg1: i32) -> (i32, i32) {
    %c0_i32 = arith.constant 0 : i32
    %c0_i32_0 = arith.constant 0 : i32
    return %arg0, %c0_i32 : i32, i32
  }
}

</mosaic_0001>

<llo_original>
// kernel: _apply.3
$region0: #{_apply.3}
  #allocation0 [shape = 'u32[]', space=smem, size = 0x4, offset = 0x4, fixed_abs, tag = 'smem constant byte address 0x4 - core index']
  #allocation1 [shape = 'u32[144,128]{1,0:T(1,128)}', space=vmem, size = 0x12000, scoped, tag = 'internal scratch']
  %s0 = inlined_call_operand.hbm [shape: f32[128,512], index: 0, kind: input, shape index: {}, may-alias: {0,2}]
  %s1 = inlined_call_operand.hbm [shape: f32[128,1], index: 1, kind: input, shape index: {}]
  %s2 = inlined_call_operand.hbm [shape: f32[128,512], index: 2, kind: output, shape index: {}, may-alias: {0,2}]
  %s3 = sld [smem:[#allocation0]]
  $region49: #{_apply.3} parent=0
    _
  %s5 = ssub.s32 1, %s3
  %s6 = scalar_select 0, %s5, %s3
  $region1: #{_apply.3} parent=0
    #allocation2 [shape = 'u8[32768]{0}', space=vmem, size = 0x8000, scoped, tag = 'input window, operand 0']
    #allocation3 [shape = 's32[2]{0}', space=sflag, size = 0x8, scoped, tag = 'scoped memory for _apply.3']
    #allocation4 [shape = 's32[2]{0}', space=sflag, size = 0x8, scoped, tag = 'scoped memory for _apply.3']
    #allocation5 [shape = 'u8[32768]{0}', space=vmem, size = 0x8000, scoped, tag = 'input window, operand 1']
    #allocation6 [shape = 's32[2]{0}', space=sflag, size = 0x8, scoped, tag = 'scoped memory for _apply.3']
    #allocation7 [shape = 'u8[32768]{0}', space=vmem, size = 0x8000, scoped, tag = 'output window, operand 0']
    %7 = vsyncpa [#allocation3], 0
    %s8 = scalar_lea.sflag [#allocation3], 1
    %9 = vsyncpa %s8, 0
    %10 = vsyncpa [#allocation6], 0
    %s11 = scalar_lea.sflag [#allocation6], 1
    %12 = vsyncpa %s11, 0
    %13 = vsyncpa [#allocation4], 0
    %s14 = scalar_lea.sflag [#allocation4], 1
    %15 = vsyncpa %s14, 0
    loop: start=0, step=1, limit=18
    $region2: #{_apply.3} parent=1 // loop_pre_header
      _
    $region3: #{_apply.3} parent=1 // loop_header
      %s17 = sphi 0, %s21
      %p18 = scmp.ge.s32.totalorder %s17, 18
      %s24 = sphi 0, %s36
      %s25 = sphi 0, %s32
      %s26 = sphi 0, %s24
      %s27 = sphi 0, %s25
      %s28 = sphi 0, %s26
      %s29 = sphi 0, %s27
      %s41 = sphi 0, %s43
      %s44 = sphi 0, %s41
      %s45 = sphi 0, %s44
      %s61 = sphi 0, %s45
      %s67 = sphi 0, %s69
      %s70 = sphi 0, %s67
      %s71 = sphi 0, %s70
      %s87 = sphi 0, %s71
      %s95 = sphi 0, %s97
      %s98 = sphi 0, %s95
      %s99 = sphi 0, %s98
      %s115 = sphi 0, %s99
    $region4: #{_apply.3} parent=1 // loop_header_branch
      %20 = sbr.rel (%p18) target = $region8
    $region5: #{_apply.3} parent=1 // loop_body
      %s22 = ssub.s32 %s17, 1
      %s23 = ssub.s32 %s17, 2
      %s30 = sadd.s32 1, %s25
      %p31 = scmp.ge.s32.totalorder %s30, 4
      %s32 = scalar_select %p31, 0, %s30
      %s33 = sadd.s32 1, %s24
      %s34 = scalar_select %p31, %s33, %s24
      %p35 = scmp.ge.s32.totalorder %s34, 4
      %s36 = scalar_select %p35, 0, %s34
      %s37 = ssub.s32 %s24, %s36
      %s38 = ssub.s32 %s25, %s32
      %s39 = sor.u32 %s37, %s38
      %p40 = scmp.eq.s32.totalorder %s39, 0
      %s42 = sadd.s32 %s41, 1
      %s43 = scalar_select %p40, %s41, %s42
      %p46 = pneg %p40
      %p47 = scmp.eq.s32.totalorder %s17, 15
      %p48 = por %p46, %p47
      %p49 = scmp.ne.s32.totalorder %s41, %s44
      %p50 = scmp.eq.s32.totalorder %s17, 0
      %p51 = por %p49, %p50
      %p52 = scmp.ne.s32.totalorder %s41, %s44
      %p53 = scmp.eq.s32.totalorder %s22, 15
      %p54 = por %p52, %p53
      %p55 = scmp.ne.s32.totalorder %s44, %s45
      %p56 = scmp.eq.s32.totalorder %s22, 0
      %p57 = por %p55, %p56
      %p58 = scmp.ne.s32.totalorder %s44, %s45
      %p59 = scmp.eq.s32.totalorder %s23, 15
      %p60 = por %p58, %p59
      %p62 = scmp.ne.s32.totalorder %s45, %s61
      %p63 = scmp.eq.s32.totalorder %s23, 0
      %p64 = por %p62, %p63
      %s65 = ssub.s32 %s24, %s36
      %p66 = scmp.eq.s32.totalorder %s65, 0
      %s68 = sadd.s32 %s67, 1
      %s69 = scalar_select %p66, %s67, %s68
      %p72 = pneg %p66
      %p73 = scmp.eq.s32.totalorder %s17, 15
      %p74 = por %p72, %p73
      %p75 = scmp.ne.s32.totalorder %s67, %s70
      %p76 = scmp.eq.s32.totalorder %s17, 0
      %p77 = por %p75, %p76
      %p78 = scmp.ne.s32.totalorder %s67, %s70
      %p79 = scmp.eq.s32.totalorder %s22, 15
      %p80 = por %p78, %p79
      %p81 = scmp.ne.s32.totalorder %s70, %s71
      %p82 = scmp.eq.s32.totalorder %s22, 0
      %p83 = por %p81, %p82
      %p84 = scmp.ne.s32.totalorder %s70, %s71
      %p85 = scmp.eq.s32.totalorder %s23, 15
      %p86 = por %p84, %p85
      %p88 = scmp.ne.s32.totalorder %s71, %s87
      %p89 = scmp.eq.s32.totalorder %s23, 0
      %p90 = por %p88, %p89
      %s91 = ssub.s32 %s24, %s36
      %s92 = ssub.s32 %s25, %s32
      %s93 = sor.u32 %s91, %s92
      %p94 = scmp.eq.s32.totalorder %s93, 0
      %s96 = sadd.s32 %s95, 1
      %s97 = scalar_select %p94, %s95, %s96
      %p100 = pneg %p94
      %p101 = scmp.eq.s32.totalorder %s17, 15
      %p102 = por %p100, %p101
      %p103 = scmp.ne.s32.totalorder %s95, %s98
      %p104 = scmp.eq.s32.totalorder %s17, 0
      %p105 = por %p103, %p104
      %p106 = scmp.ne.s32.totalorder %s95, %s98
      %p107 = scmp.eq.s32.totalorder %s22, 15
      %p108 = por %p106, %p107
      %p109 = scmp.ne.s32.totalorder %s98, %s99
      %p110 = scmp.eq.s32.totalorder %s22, 0
      %p111 = por %p109, %p110
      %p112 = scmp.ne.s32.totalorder %s98, %s99
      %p113 = scmp.eq.s32.totalorder %s23, 15
      %p114 = por %p112, %p113
      %p116 = scmp.ne.s32.totalorder %s99, %s115
      %p117 = scmp.eq.s32.totalorder %s23, 0
      %p118 = por %p116, %p117
      %p119 = scmp.le.s32.totalorder 1, %s17
      %p120 = scmp.lt.s32.totalorder %s17, 17
      %p121 = pnand %p119, %p120
      %p122 = pneg %p121
      // Predicated region
      $region9: #{_apply.3} parent=5 // pred_check
        _
      $region10: #{_apply.3} parent=5 // pred_check_branch
        %124 = sbr.rel (%p121) target = $region12
      $region11: #{_apply.3} parent=5 // pred_region
        %s125 = ssub.s32 %s17, 1
      $region12: #{_apply.3} parent=5 // pred_fallthru
        _
      %p126 = scmp.lt.s32.totalorder %s17, 16
      // Predicated region
      $region13: #{_apply.3} parent=5 // pred_check
        %p127 = pneg %p126
      $region14: #{_apply.3} parent=5 // pred_check_branch
        %129 = sbr.rel (%p127) target = $region16
      $region15: #{_apply.3} parent=5 // pred_region
        // Predicated region
        $region17: #{_apply.3} parent=15 // pred_check
          %p130 = pneg %p51
        $region18: #{_apply.3} parent=15 // pred_check_branch
          %132 = sbr.rel (%p130) target = $region20
        $region19: #{_apply.3} parent=15 // pred_region
          %s133 = sand.u32 %s41, 1
          %s134 = scalar_lea.sflag [#allocation3], %s133
          %s135 = sand.u32 %s41, 1
          %s136 = smul.addr %s135, 32
          %s137 = scalar_lea.vmem [#allocation2], %s136
          %s138 = smul.u32 4, %s24
          %s140 = ssub.s32 512, 512
          %141 = vsyncadd %s134, %s140
          %s142 = smul.addr %s138, 4
          %s143 = sadd.s32 %s25, %s142
          %s144 = smul.addr %s143, 128
          %s145 = scalar_lea.hbm %s0, %s144
          %s146 = sshll.u32 %s137, 4
          %s147 = int_to_ptr.vmem [resolvable:$true] %s146
          %152 = dma.hbm_to_vmem [thread:$0]  %s145, 512, %s147, %s134, 512, 128, 8
        $region20: #{_apply.3} parent=15 // pred_fallthru
          _
        // Predicated region
        $region21: #{_apply.3} parent=15 // pred_check
          %p153 = pneg %p77
        $region22: #{_apply.3} parent=15 // pred_check_branch
          %155 = sbr.rel (%p153) target = $region24
        $region23: #{_apply.3} parent=15 // pred_region
          %s156 = sand.u32 %s67, 1
          %s157 = scalar_lea.sflag [#allocation6], %s156
          %s158 = sand.u32 %s67, 1
          %s159 = smul.addr %s158, 32
          %s160 = scalar_lea.vmem [#allocation5], %s159
          %s161 = smul.u32 4, %s24
          %s163 = ssub.s32 512, 512
          %164 = vsyncadd %s157, %s163
          %s165 = smul.addr %s161, 128
          %s166 = scalar_lea.hbm %s1, %s165
          %s167 = sshll.u32 %s160, 4
          %s168 = int_to_ptr.vmem [resolvable:$true] %s167
          %173 = dma.hbm_to_vmem [thread:$0]  %s166, 512, %s168, %s157, 128, 128, 8
        $region24: #{_apply.3} parent=15 // pred_fallthru
          _
      $region16: #{_apply.3} parent=5 // pred_fallthru
        _
      %p174 = scmp.le.s32.totalorder 1, %s17
      %p175 = scmp.lt.s32.totalorder %s17, 17
      %p176 = pnand %p174, %p175
      %p177 = pneg %p176
      // Predicated region
      $region25: #{_apply.3} parent=5 // pred_check
        _
      $region26: #{_apply.3} parent=5 // pred_check_branch
        %179 = sbr.rel (%p176) target = $region28
      $region27: #{_apply.3} parent=5 // pred_region
        %s180 = ssub.s32 %s17, 1
        %s181 = sand.u32 %s44, 1
        %s182 = scalar_lea.sflag [#allocation3], %s181
        %s183 = sand.u32 %s44, 1
        %s184 = smul.addr %s183, 32
        %s185 = scalar_lea.vmem [#allocation2], %s184
        // Predicated region
        $region29: #{_apply.3} parent=27 // pred_check
          %p186 = pneg %p57
        $region30: #{_apply.3} parent=27 // pred_check_branch
          %188 = sbr.rel (%p186) target = $region32
        $region31: #{_apply.3} parent=27 // pred_region
          %189 = dma.done %s182, 512
        $region32: #{_apply.3} parent=27 // pred_fallthru
          _
        %s190 = sand.u32 %s70, 1
        %s191 = scalar_lea.sflag [#allocation6], %s190
        %s192 = sand.u32 %s70, 1
        %s193 = smul.addr %s192, 32
        %s194 = scalar_lea.vmem [#allocation5], %s193
        // Predicated region
        $region33: #{_apply.3} parent=27 // pred_check
          %p195 = pneg %p83
        $region34: #{_apply.3} parent=27 // pred_check_branch
          %197 = sbr.rel (%p195) target = $region36
        $region35: #{_apply.3} parent=27 // pred_region
          %198 = dma.done %s191, 512
        $region36: #{_apply.3} parent=27 // pred_fallthru
          _
        %s199 = sand.u32 %s44, 1
        %s200 = scalar_lea.sflag [#allocation3], %s199
        %s201 = sand.u32 %s44, 1
        %s202 = smul.addr %s201, 32
        %s203 = scalar_lea.vmem [#allocation2], %s202
        %p204 = pneg %p57
        %p205 = pneg %p54
        %s206 = sand.u32 %s70, 1
        %s207 = scalar_lea.sflag [#allocation6], %s206
        %s208 = sand.u32 %s70, 1
        %s209 = smul.addr %s208, 32
        %s210 = scalar_lea.vmem [#allocation5], %s209
        %p211 = pneg %p83
        %p212 = pneg %p80
        %p213 = pneg %p111
        %p214 = pneg %p108
        %s215 = sand.u32 %s98, 1
        %s216 = scalar_lea.sflag [#allocation4], %s215
        %s217 = sand.u32 %s98, 1
        %s218 = smul.addr %s217, 32
        %s219 = scalar_lea.vmem [#allocation7], %s218
        %s220 = smul.u32 4, %s26
        %s221 = smul.u32 4, %s26
        %s222 = smul.u32 4, %s26
        %v223 = vld [vmem:[%s185] sm:$0xff]
        %v224 = vld [vmem:[%s185 + $0x8] sm:$0xff]
        %v225 = vld [vmem:[%s185 + $0x10] sm:$0xff]
        %v226 = vld [vmem:[%s185 + $0x18] sm:$0xff]
        %v227 = vld [vmem:[%s194] sm:$0xff]
        %v228 = vld [vmem:[%s194 + $0x8] sm:$0xff]
        %v229 = vld [vmem:[%s194 + $0x10] sm:$0xff]
        %v230 = vld [vmem:[%s194 + $0x18] sm:$0xff]
        %232 = vset.pattern.permute.xlu0 0
        %233 = vperm.xlu0 %232, %v227
        %v234 = vpop.permute.xlu0 %233
        %237 = vset.pattern.permute.xlu0 0
        %238 = vperm.xlu0 %237, %v228
        %v239 = vpop.permute.xlu0 %238
        %242 = vset.pattern.permute.xlu0 0
        %243 = vperm.xlu0 %242, %v229
        %v244 = vpop.permute.xlu0 %243
        %247 = vset.pattern.permute.xlu0 0
        %248 = vperm.xlu0 %247, %v230
        %v249 = vpop.permute.xlu0 %248
        %v251 = vsub.f32 %v223, %v234
        %v252 = vsub.f32 %v224, %v239
        %v253 = vsub.f32 %v225, %v244
        %v254 = vsub.f32 %v226, %v249
        %255 = vst [vmem:[%s219] sm:$0xff] %v251
        %256 = vst [vmem:[%s219 + $0x8] sm:$0xff] %v252
        %257 = vst [vmem:[%s219 + $0x10] sm:$0xff] %v253
        %258 = vst [vmem:[%s219 + $0x18] sm:$0xff] %v254
        %s259 = sand.u32 %s98, 1
        %s260 = scalar_lea.sflag [#allocation4], %s259
        %s261 = sand.u32 %s98, 1
        %s262 = smul.addr %s261, 32
        %s263 = scalar_lea.vmem [#allocation7], %s262
        // Predicated region
        $region37: #{_apply.3} parent=27 // pred_check
          %p264 = pneg %p108
        $region38: #{_apply.3} parent=27 // pred_check_branch
          %266 = sbr.rel (%p264) target = $region40
        $region39: #{_apply.3} parent=27 // pred_region
          %s267 = smul.u32 4, %s26
          %s269 = ssub.s32 512, 512
          %270 = vsyncadd %s260, %s269
          %s271 = smul.addr %s267, 4
          %s272 = sadd.s32 %s27, %s271
          %s273 = smul.addr %s272, 128
          %s274 = scalar_lea.hbm %s2, %s273
          %s275 = sshll.u32 %s263, 4
          %s276 = int_to_ptr.vmem [resolvable:$true] %s275
          %281 = dma.vmem_to_hbm [thread:$0]  %s276, 512, %s274, %s260, 128, 512, 8
        $region40: #{_apply.3} parent=27 // pred_fallthru
          _
      $region28: #{_apply.3} parent=5 // pred_fallthru
        _
      %p282 = scmp.le.s32.totalorder 2, %s17
      // Predicated region
      $region41: #{_apply.3} parent=5 // pred_check
        %p283 = pneg %p282
      $region42: #{_apply.3} parent=5 // pred_check_branch
        %285 = sbr.rel (%p283) target = $region44
      $region43: #{_apply.3} parent=5 // pred_region
        %s286 = ssub.s32 %s17, 2
        // Predicated region
        $region45: #{_apply.3} parent=43 // pred_check
          %p287 = pneg %p114
        $region46: #{_apply.3} parent=43 // pred_check_branch
          %289 = sbr.rel (%p287) target = $region48
        $region47: #{_apply.3} parent=43 // pred_region
          %s290 = sand.u32 %s99, 1
          %s291 = scalar_lea.sflag [#allocation4], %s290
          %s292 = sand.u32 %s99, 1
          %s293 = smul.addr %s292, 32
          %s294 = scalar_lea.vmem [#allocation7], %s293
          %295 = dma.done %s291, 512
        $region48: #{_apply.3} parent=43 // pred_fallthru
          _
      $region44: #{_apply.3} parent=5 // pred_fallthru
        _
    $region6: #{_apply.3} parent=1 // loop_footer
      %s21 = sadd.s32 1, %s17
    $region7: #{_apply.3} parent=1 // loop_footer_branch
      %16 = sbr.rel target = $region3
    $region8: #{_apply.3} parent=1 // loop_exit
      _
    %296 = vsyncpa [#allocation3], 1
    %s297 = scalar_lea.sflag [#allocation3], 1
    %298 = vsyncpa %s297, 1
    %299 = vsyncpa [#allocation6], 1
    %s300 = scalar_lea.sflag [#allocation6], 1
    %301 = vsyncpa %s300, 1
    %302 = vsyncpa [#allocation4], 1
    %s303 = scalar_lea.sflag [#allocation4], 1
    %304 = vsyncpa %s303, 1

// kernel: _apply.2
$region0: #{_apply.2}
  #allocation0 [shape = 'u32[]', space=smem, size = 0x4, offset = 0x4, fixed_abs, tag = 'smem constant byte address 0x4 - core index']
  #allocation1 [shape = 'u32[144,128]{1,0:T(1,128)}', space=vmem, size = 0x12000, scoped, tag = 'internal scratch']
  #allocation2 [shape = 'f32[32,1]{1,0:T(8,128)}', space=vmem, size = 0x4000, scoped, tag = 'scratch operand']
  #allocation3 [shape = 'f32[32,1]{1,0:T(8,128)}', space=vmem, size = 0x4000, scoped, tag = 'scratch operand']
  %s0 = inlined_call_operand.hbm [shape: f32[128,64], index: 0, kind: input, shape index: {}]
  %s1 = inlined_call_operand.hbm [shape: f32[64,512], index: 1, kind: input, shape index: {}]
  %s2 = inlined_call_operand.hbm [shape: f32[1,512], index: 2, kind: input, shape index: {}]
  %s3 = inlined_call_operand.hbm [shape: f32[128,512], index: 3, kind: output, shape index: {0}]
  %s4 = inlined_call_operand.hbm [shape: f32[128,1], index: 4, kind: output, shape index: {1}]
  %5 = xla_tuple %s3, %s4
  %s6 = sld [smem:[#allocation0]]
  $region73: #{_apply.2} parent=0
    _
  %s8 = ssub.s32 1, %s6
  %s9 = scalar_select 0, %s8, %s6
  $region1: #{_apply.2} parent=0
    #allocation4 [shape = 'u8[32768]{0}', space=vmem, size = 0x8000, scoped, tag = 'input window, operand 0']
    #allocation5 [shape = 's32[2]{0}', space=sflag, size = 0x8, scoped, tag = 'scoped memory for _apply.2']
    #allocation6 [shape = 's32[2]{0}', space=sflag, size = 0x8, scoped, tag = 'scoped memory for _apply.2']
    #allocation7 [shape = 'u8[65536]{0}', space=vmem, size = 0x10000, scoped, tag = 'input window, operand 1']
    #allocation8 [shape = 's32[2]{0}', space=sflag, size = 0x8, scoped, tag = 'scoped memory for _apply.2']
    #allocation9 [shape = 'u8[1024]{0}', space=vmem, size = 0x400, scoped, tag = 'input window, operand 2']
    #allocation10 [shape = 'u8[32768]{0}', space=vmem, size = 0x8000, scoped, tag = 'output window, operand 0']
    #allocation11 [shape = 'u8[32768]{0}', space=vmem, size = 0x8000, scoped, tag = 'output window, operand 1']
    #allocation12 [shape = 's32[2]{0}', space=sflag, size = 0x8, scoped, tag = 'scoped memory for _apply.2']
    %10 = vsyncpa [#allocation5], 0
    %s11 = scalar_lea.sflag [#allocation5], 1
    %12 = vsyncpa %s11, 0
    %13 = vsyncpa [#allocation8], 0
    %s14 = scalar_lea.sflag [#allocation8], 1
    %15 = vsyncpa %s14, 0
    %16 = vsyncpa [#allocation6], 0
    %s17 = scalar_lea.sflag [#allocation6], 1
    %18 = vsyncpa %s17, 0
    %19 = vsyncpa [#allocation12], 0
    %s20 = scalar_lea.sflag [#allocation12], 1
    %21 = vsyncpa %s20, 0
    loop: start=0, step=1, limit=18
    $region2: #{_apply.2} parent=1 // loop_pre_header
      _
    $region3: #{_apply.2} parent=1 // loop_header
      %s23 = sphi 0, %s27
      %p24 = scmp.ge.s32.totalorder %s23, 18
      %s30 = sphi 0, %s42
      %s31 = sphi 0, %s38
      %s32 = sphi 0, %s30
      %s33 = sphi 0, %s31
      %s34 = sphi 0, %s32
      %s35 = sphi 0, %s33
      %s45 = sphi 0, %s47
      %s48 = sphi 0, %s45
      %s49 = sphi 0, %s48
      %s65 = sphi 0, %s49
      %s71 = sphi 0, %s73
      %s74 = sphi 0, %s71
      %s75 = sphi 0, %s74
      %s91 = sphi 0, %s75
      %s97 = sphi 0, %s99
      %s100 = sphi 0, %s97
      %s101 = sphi 0, %s100
      %s117 = sphi 0, %s101
      %s125 = sphi 0, %s127
      %s128 = sphi 0, %s125
      %s129 = sphi 0, %s128
      %s145 = sphi 0, %s129
      %s151 = sphi 0, %s153
      %s154 = sphi 0, %s151
      %s155 = sphi 0, %s154
      %s171 = sphi 0, %s155
    $region4: #{_apply.2} parent=1 // loop_header_branch
      %26 = sbr.rel (%p24) target = $region8
    $region5: #{_apply.2} parent=1 // loop_body
      %s28 = ssub.s32 %s23, 1
      %s29 = ssub.s32 %s23, 2
      %s36 = sadd.s32 1, %s31
      %p37 = scmp.ge.s32.totalorder %s36, 4
      %s38 = scalar_select %p37, 0, %s36
      %s39 = sadd.s32 1, %s30
      %s40 = scalar_select %p37, %s39, %s30
      %p41 = scmp.ge.s32.totalorder %s40, 4
      %s42 = scalar_select %p41, 0, %s40
      %s43 = ssub.s32 %s30, %s42
      %p44 = scmp.eq.s32.totalorder %s43, 0
      %s46 = sadd.s32 %s45, 1
      %s47 = scalar_select %p44, %s45, %s46
      %p50 = pneg %p44
      %p51 = scmp.eq.s32.totalorder %s23, 15
      %p52 = por %p50, %p51
      %p53 = scmp.ne.s32.totalorder %s45, %s48
      %p54 = scmp.eq.s32.totalorder %s23, 0
      %p55 = por %p53, %p54
      %p56 = scmp.ne.s32.totalorder %s45, %s48
      %p57 = scmp.eq.s32.totalorder %s28, 15
      %p58 = por %p56, %p57
      %p59 = scmp.ne.s32.totalorder %s48, %s49
      %p60 = scmp.eq.s32.totalorder %s28, 0
      %p61 = por %p59, %p60
      %p62 = scmp.ne.s32.totalorder %s48, %s49
      %p63 = scmp.eq.s32.totalorder %s29, 15
      %p64 = por %p62, %p63
      %p66 = scmp.ne.s32.totalorder %s49, %s65
      %p67 = scmp.eq.s32.totalorder %s29, 0
      %p68 = por %p66, %p67
      %s69 = ssub.s32 %s31, %s38
      %p70 = scmp.eq.s32.totalorder %s69, 0
      %s72 = sadd.s32 %s71, 1
      %s73 = scalar_select %p70, %s71, %s72
      %p76 = pneg %p70
      %p77 = scmp.eq.s32.totalorder %s23, 15
      %p78 = por %p76, %p77
      %p79 = scmp.ne.s32.totalorder %s71, %s74
      %p80 = scmp.eq.s32.totalorder %s23, 0
      %p81 = por %p79, %p80
      %p82 = scmp.ne.s32.totalorder %s71, %s74
      %p83 = scmp.eq.s32.totalorder %s28, 15
      %p84 = por %p82, %p83
      %p85 = scmp.ne.s32.totalorder %s74, %s75
      %p86 = scmp.eq.s32.totalorder %s28, 0
      %p87 = por %p85, %p86
      %p88 = scmp.ne.s32.totalorder %s74, %s75
      %p89 = scmp.eq.s32.totalorder %s29, 15
      %p90 = por %p88, %p89
      %p92 = scmp.ne.s32.totalorder %s75, %s91
      %p93 = scmp.eq.s32.totalorder %s29, 0
      %p94 = por %p92, %p93
      %s95 = ssub.s32 %s31, %s38
      %p96 = scmp.eq.s32.totalorder %s95, 0
      %s98 = sadd.s32 %s97, 1
      %s99 = scalar_select %p96, %s97, %s98
      %p102 = pneg %p96
      %p103 = scmp.eq.s32.totalorder %s23, 15
      %p104 = por %p102, %p103
      %p105 = scmp.ne.s32.totalorder %s97, %s100
      %p106 = scmp.eq.s32.totalorder %s23, 0
      %p107 = por %p105, %p106
      %p108 = scmp.ne.s32.totalorder %s97, %s100
      %p109 = scmp.eq.s32.totalorder %s28, 15
      %p110 = por %p108, %p109
      %p111 = scmp.ne.s32.totalorder %s100, %s101
      %p112 = scmp.eq.s32.totalorder %s28, 0
      %p113 = por %p111, %p112
      %p114 = scmp.ne.s32.totalorder %s100, %s101
      %p115 = scmp.eq.s32.totalorder %s29, 15
      %p116 = por %p114, %p115
      %p118 = scmp.ne.s32.totalorder %s101, %s117
      %p119 = scmp.eq.s32.totalorder %s29, 0
      %p120 = por %p118, %p119
      %s121 = ssub.s32 %s30, %s42
      %s122 = ssub.s32 %s31, %s38
      %s123 = sor.u32 %s121, %s122
      %p124 = scmp.eq.s32.totalorder %s123, 0
      %s126 = sadd.s32 %s125, 1
      %s127 = scalar_select %p124, %s125, %s126
      %p130 = pneg %p124
      %p131 = scmp.eq.s32.totalorder %s23, 15
      %p132 = por %p130, %p131
      %p133 = scmp.ne.s32.totalorder %s125, %s128
      %p134 = scmp.eq.s32.totalorder %s23, 0
      %p135 = por %p133, %p134
      %p136 = scmp.ne.s32.totalorder %s125, %s128
      %p137 = scmp.eq.s32.totalorder %s28, 15
      %p138 = por %p136, %p137
      %p139 = scmp.ne.s32.totalorder %s128, %s129
      %p140 = scmp.eq.s32.totalorder %s28, 0
      %p141 = por %p139, %p140
      %p142 = scmp.ne.s32.totalorder %s128, %s129
      %p143 = scmp.eq.s32.totalorder %s29, 15
      %p144 = por %p142, %p143
      %p146 = scmp.ne.s32.totalorder %s129, %s145
      %p147 = scmp.eq.s32.totalorder %s29, 0
      %p148 = por %p146, %p147
      %s149 = ssub.s32 %s30, %s42
      %p150 = scmp.eq.s32.totalorder %s149, 0
      %s152 = sadd.s32 %s151, 1
      %s153 = scalar_select %p150, %s151, %s152
      %p156 = pneg %p150
      %p157 = scmp.eq.s32.totalorder %s23, 15
      %p158 = por %p156, %p157
      %p159 = scmp.ne.s32.totalorder %s151, %s154
      %p160 = scmp.eq.s32.totalorder %s23, 0
      %p161 = por %p159, %p160
      %p162 = scmp.ne.s32.totalorder %s151, %s154
      %p163 = scmp.eq.s32.totalorder %s28, 15
      %p164 = por %p162, %p163
      %p165 = scmp.ne.s32.totalorder %s154, %s155
      %p166 = scmp.eq.s32.totalorder %s28, 0
      %p167 = por %p165, %p166
      %p168 = scmp.ne.s32.totalorder %s154, %s155
      %p169 = scmp.eq.s32.totalorder %s29, 15
      %p170 = por %p168, %p169
      %p172 = scmp.ne.s32.totalorder %s155, %s171
      %p173 = scmp.eq.s32.totalorder %s29, 0
      %p174 = por %p172, %p173
      %p175 = scmp.le.s32.totalorder 1, %s23
      %p176 = scmp.lt.s32.totalorder %s23, 17
      %p177 = pnand %p175, %p176
      %p178 = pneg %p177
      // Predicated region
      $region9: #{_apply.2} parent=5 // pred_check
        _
      $region10: #{_apply.2} parent=5 // pred_check_branch
        %180 = sbr.rel (%p177) target = $region12
      $region11: #{_apply.2} parent=5 // pred_region
        %s181 = ssub.s32 %s23, 1
      $region12: #{_apply.2} parent=5 // pred_fallthru
        _
      %p182 = scmp.lt.s32.totalorder %s23, 16
      // Predicated region
      $region13: #{_apply.2} parent=5 // pred_check
        %p183 = pneg %p182
      $region14: #{_apply.2} parent=5 // pred_check_branch
        %185 = sbr.rel (%p183) target = $region16
      $region15: #{_apply.2} parent=5 // pred_region
        // Predicated region
        $region17: #{_apply.2} parent=15 // pred_check
          %p186 = pneg %p55
        $region18: #{_apply.2} parent=15 // pred_check_branch
          %188 = sbr.rel (%p186) target = $region20
        $region19: #{_apply.2} parent=15 // pred_region
          %s189 = sand.u32 %s45, 1
          %s190 = scalar_lea.sflag [#allocation5], %s189
          %s191 = sand.u32 %s45, 1
          %s192 = smul.addr %s191, 32
          %s193 = scalar_lea.vmem [#allocation4], %s192
          %s194 = smul.u32 4, %s30
          %s196 = ssub.s32 512, 512
          %197 = vsyncadd %s190, %s196
          %s198 = smul.addr %s194, 128
          %s199 = scalar_lea.hbm %s0, %s198
          %s200 = sshll.u32 %s193, 4
          %s201 = int_to_ptr.vmem [resolvable:$true] %s200
          %206 = dma.hbm_to_vmem [thread:$0]  %s199, 512, %s201, %s190, 128, 128, 8
        $region20: #{_apply.2} parent=15 // pred_fallthru
          _
        // Predicated region
        $region21: #{_apply.2} parent=15 // pred_check
          %p207 = pneg %p81
        $region22: #{_apply.2} parent=15 // pred_check_branch
          %209 = sbr.rel (%p207) target = $region24
        $region23: #{_apply.2} parent=15 // pred_region
          %s210 = sand.u32 %s23, 1
          %s211 = scalar_lea.sflag [#allocation8], %s210
          %s212 = sand.u32 %s71, 1
          %s213 = smul.addr %s212, 64
          %s214 = scalar_lea.vmem [#allocation7], %s213
          %s216 = ssub.s32 1024, 1024
          %217 = vsyncadd %s211, %s216
          %s218 = smul.addr %s31, 128
          %s219 = scalar_lea.hbm %s1, %s218
          %s220 = sshll.u32 %s214, 4
          %s221 = int_to_ptr.vmem [resolvable:$true] %s220
          %226 = dma.hbm_to_vmem [thread:$0]  %s219, 1024, %s221, %s211, 512, 128, 8
        $region24: #{_apply.2} parent=15 // pred_fallthru
          _
        // Predicated region
        $region25: #{_apply.2} parent=15 // pred_check
          %p227 = pneg %p107
        $region26: #{_apply.2} parent=15 // pred_check_branch
          %229 = sbr.rel (%p227) target = $region28
        $region27: #{_apply.2} parent=15 // pred_region
          %s230 = sand.u32 %s23, 1
          %s231 = scalar_lea.sflag [#allocation8], %s230
          %s232 = sand.u32 %s97, 1
          %s233 = scalar_lea.vmem [#allocation9], %s232
          %s235 = ssub.s32 16, 16
          %236 = vsyncadd %s231, %s235
          %s237 = smul.addr %s31, 16
          %s238 = scalar_lea.hbm %s2, %s237
          %s240 = sshll.u32 %s233, 4
          %s241 = int_to_ptr.vmem [resolvable:$true] %s240
          %243 = dma.hbm_to_vmem [thread:$0]  %s238, 16, %s241, %s231
        $region28: #{_apply.2} parent=15 // pred_fallthru
          _
      $region16: #{_apply.2} parent=5 // pred_fallthru
        _
      %p244 = scmp.le.s32.totalorder 1, %s23
      %p245 = scmp.lt.s32.totalorder %s23, 17
      %p246 = pnand %p244, %p245
      %p247 = pneg %p246
      // Predicated region
      $region29: #{_apply.2} parent=5 // pred_check
        _
      $region30: #{_apply.2} parent=5 // pred_check_branch
        %249 = sbr.rel (%p246) target = $region32
      $region31: #{_apply.2} parent=5 // pred_region
        %s250 = ssub.s32 %s23, 1
        %s251 = sand.u32 %s48, 1
        %s252 = scalar_lea.sflag [#allocation5], %s251
        %s253 = sand.u32 %s48, 1
        %s254 = smul.addr %s253, 32
        %s255 = scalar_lea.vmem [#allocation4], %s254
        // Predicated region
        $region33: #{_apply.2} parent=31 // pred_check
          %p256 = pneg %p61
        $region34: #{_apply.2} parent=31 // pred_check_branch
          %258 = sbr.rel (%p256) target = $region36
        $region35: #{_apply.2} parent=31 // pred_region
          %259 = dma.done %s252, 512
        $region36: #{_apply.2} parent=31 // pred_fallthru
          _
        %s260 = sand.u32 %s28, 1
        %s261 = scalar_lea.sflag [#allocation8], %s260
        %s262 = sand.u32 %s74, 1
        %s263 = smul.addr %s262, 64
        %s264 = scalar_lea.vmem [#allocation7], %s263
        // Predicated region
        $region37: #{_apply.2} parent=31 // pred_check
          %p265 = pneg %p87
        $region38: #{_apply.2} parent=31 // pred_check_branch
          %267 = sbr.rel (%p265) target = $region40
        $region39: #{_apply.2} parent=31 // pred_region
          %268 = dma.done %s261, 1024
        $region40: #{_apply.2} parent=31 // pred_fallthru
          _
        %s269 = sand.u32 %s28, 1
        %s270 = scalar_lea.sflag [#allocation8], %s269
        %s271 = sand.u32 %s100, 1
        %s272 = scalar_lea.vmem [#allocation9], %s271
        // Predicated region
        $region41: #{_apply.2} parent=31 // pred_check
          %p273 = pneg %p113
        $region42: #{_apply.2} parent=31 // pred_check_branch
          %275 = sbr.rel (%p273) target = $region44
        $region43: #{_apply.2} parent=31 // pred_region
          %276 = dma.done %s270, 16
        $region44: #{_apply.2} parent=31 // pred_fallthru
          _
        %s277 = sand.u32 %s48, 1
        %s278 = scalar_lea.sflag [#allocation5], %s277
        %s279 = sand.u32 %s48, 1
        %s280 = smul.addr %s279, 32
        %s281 = scalar_lea.vmem [#allocation4], %s280
        %p282 = pneg %p61
        %p283 = pneg %p58
        %s284 = sand.u32 %s28, 1
        %s285 = scalar_lea.sflag [#allocation8], %s284
        %s286 = sand.u32 %s74, 1
        %s287 = smul.addr %s286, 64
        %s288 = scalar_lea.vmem [#allocation7], %s287
        %p289 = pneg %p87
        %p290 = pneg %p84
        %s291 = sand.u32 %s28, 1
        %s292 = scalar_lea.sflag [#allocation8], %s291
        %s293 = sand.u32 %s100, 1
        %s294 = scalar_lea.vmem [#allocation9], %s293
        %p295 = pneg %p113
        %p296 = pneg %p110
        %p297 = pneg %p141
        %p298 = pneg %p138
        %s299 = sand.u32 %s128, 1
        %s300 = scalar_lea.sflag [#allocation6], %s299
        %s301 = sand.u32 %s128, 1
        %s302 = smul.addr %s301, 32
        %s303 = scalar_lea.vmem [#allocation10], %s302
        %p304 = pneg %p167
        %p305 = pneg %p164
        %s306 = sand.u32 %s154, 1
        %s307 = scalar_lea.sflag [#allocation12], %s306
        %s308 = sand.u32 %s154, 1
        %s309 = smul.addr %s308, 32
        %s310 = scalar_lea.vmem [#allocation11], %s309
        %s311 = smul.u32 4, %s32
        %s312 = smul.u32 4, %s32
        %s313 = smul.u32 4, %s32
        %v314 = vld [vmem:[%s255] sm:$0xff]
        %v315 = vld [vmem:[%s255 + $0x8] sm:$0xff]
        %v316 = vld [vmem:[%s255 + $0x10] sm:$0xff]
        %v317 = vld [vmem:[%s255 + $0x18] sm:$0xff]
        %v318 = vld [vmem:[%s264] sm:$0xff]
        %v319 = vld [vmem:[%s264 + $0x8] sm:$0xff]
        %v320 = vld [vmem:[%s264 + $0x10] sm:$0xff]
        %v321 = vld [vmem:[%s264 + $0x18] sm:$0xff]
        %v322 = vld [vmem:[%s264 + $0x20] sm:$0xff]
        %v323 = vld [vmem:[%s264 + $0x28] sm:$0xff]
        %v324 = vld [vmem:[%s264 + $0x30] sm:$0xff]
        %v325 = vld [vmem:[%s264 + $0x38] sm:$0xff]
        %v326 = vld [vmem:[%s272] sm:$0x1]
        %v328 = vlaneseq
        %v329 = vshrl.u32 %v328, 7
        %v330 = vsub.s32 0, %v329
        %v331 = vrot.slane %v326, %v330
        %vm333 = vcmask 523264
        %v335 = vsel %vm333, %v314, 0
        %v338 = vsel %vm333, %v315, 0
        %v341 = vsel %vm333, %v316, 0
        %v344 = vsel %vm333, %v317, 0
        %346 = vmatprep.subr.mxu0 0.0
        %347 = vmatpush1.msra.mxu0 %v318
        %348 = vmatprep.subr.mxu0 0.0
        %349 = vmatpush1.msra.mxu0 %v319
        %350 = vmatprep.subr.mxu0 0.0
        %351 = vmatpush1.msra.mxu0 %v320
        %352 = vmatprep.subr.mxu0 0.0
        %353 = vmatpush1.msra.mxu0 %v321
        %354 = vmatprep.subr.mxu0 0.0
        %355 = vmatpush1.msra.mxu0 %v322
        %356 = vmatprep.subr.mxu0 0.0
        %357 = vmatpush1.msra.mxu0 %v323
        %358 = vmatprep.subr.mxu0 0.0
        %359 = vmatpush1.msra.mxu0 %v324
        %360 = vmatprep.subr.mxu0 0.0
        %361 = vmatpush1.msra.mxu0 %v325
        %362 = vmatprep.subr.mxu0 0.0
        %363 = vmatpush1.msra.mxu0 0.0
        %364 = vmatprep.subr.mxu0 0.0
        %365 = vmatpush1.msra.mxu0 0.0
        %366 = vmatprep.subr.mxu0 0.0
        %367 = vmatpush1.msra.mxu0 0.0
        %368 = vmatprep.subr.mxu0 0.0
        %369 = vmatpush1.msra.mxu0 0.0
        %370 = vmatprep.subr.mxu0 0.0
        %371 = vmatpush1.msra.mxu0 0.0
        %372 = vmatprep.subr.mxu0 0.0
        %373 = vmatpush1.msra.mxu0 0.0
        %374 = vmatprep.subr.mxu0 0.0
        %375 = vmatpush1.msra.mxu0 0.0
        %376 = vmatprep.subr.mxu0 0.0
        %377 = vmatpush1.msra.mxu0 0.0
        %378 = vmatprep.subr.mxu0 0.0
        %379 = vmatpush1.msra.mxu0 0.0
        %380 = vmatprep.subr.mxu0 0.0
        %381 = vmatpush1.msra.mxu0 0.0
        %382 = vmatprep.subr.mxu0 0.0
        %383 = vmatpush1.msra.mxu0 0.0
        %384 = vmatprep.subr.mxu0 0.0
        %385 = vmatpush1.msra.mxu0 0.0
        %386 = vmatprep.subr.mxu0 0.0
        %387 = vmatpush1.msra.mxu0 0.0
        %388 = vmatprep.subr.mxu0 0.0
        %389 = vmatpush1.msra.mxu0 0.0
        %390 = vmatprep.subr.mxu0 0.0
        %391 = vmatpush1.msra.mxu0 0.0
        %392 = vmatprep.subr.mxu0 0.0
        %393 = vmatpush1.msra.mxu0 0.0
        %394 = vmatprep.subr.mxu0 0.0
        %395 = vmatpush1.msra.mxu0 0.0
        %396 = vmatprep.subr.mxu0 0.0
        %397 = vmatpush1.msra.mxu0 0.0
        %398 = vmatprep.subr.mxu0 0.0
        %399 = vmatpush1.msra.mxu0 0.0
        %400 = vmatprep.subr.mxu0 0.0
        %401 = vmatpush1.msra.mxu0 0.0
        %402 = vmatprep.subr.mxu0 0.0
        %403 = vmatpush1.msra.mxu0 0.0
        %404 = vmatprep.subr.mxu0 0.0
        %405 = vmatpush1.msra.mxu0 0.0
        %406 = vmatprep.subr.mxu0 0.0
        %407 = vmatpush1.msra.mxu0 0.0
        %408 = vmatprep.subr.mxu0 0.0
        %409 = vmatpush1.msra.mxu0 0.0
        %410 = vmatprep.mubr.f32.mxu0 0.0
        %411 = vmatmul.mubr.f32.gmra.mrb[0].mxu0 %v335
        %v412 = vpop.f32.mrb[0].mxu0
        %v413 = vadd.f32 %v331, %v412
        %v414 = vpop.f32.mrb[0].mxu0
        %415 = vmatprep.mubr.f32.mxu0 0.0
        %416 = vmatmul.mubr.f32.gmra.mrb[0].mxu0 %v338
        %v417 = vpop.f32.mrb[0].mxu0
        %v418 = vadd.f32 %v331, %v417
        %v419 = vpop.f32.mrb[0].mxu0
        %420 = vmatprep.mubr.f32.mxu0 0.0
        %421 = vmatmul.mubr.f32.gmra.mrb[0].mxu0 %v341
        %v422 = vpop.f32.mrb[0].mxu0
        %v423 = vadd.f32 %v331, %v422
        %v424 = vpop.f32.mrb[0].mxu0
        %425 = vmatprep.mubr.f32.mxu0 0.0
        %426 = vmatmul.mubr.f32.gmra.mrb[0].mxu0 %v344
        %v427 = vpop.f32.mrb[0].mxu0
        %v428 = vadd.f32 %v331, %v427
        %v429 = vpop.f32.mrb[0].mxu0
        %430 = vdwg.mxu0
        %431 = vst [vmem:[%s303] sm:$0xff] %v413
        %432 = vst [vmem:[%s303 + $0x8] sm:$0xff] %v418
        %433 = vst [vmem:[%s303 + $0x10] sm:$0xff] %v423
        %434 = vst [vmem:[%s303 + $0x18] sm:$0xff] %v428
        %p435 = scmp.eq.s32.totalorder %s33, 0
        // Predicated region
        $region45: #{_apply.2} parent=31 // pred_check
          %p436 = pneg %p435
        $region46: #{_apply.2} parent=31 // pred_check_branch
          %438 = sbr.rel (%p436) target = $region48
        $region47: #{_apply.2} parent=31 // pred_region
          %vm439 = vcmask 7168
          %440 = vst.msk [vmem:[#allocation2] sm:$0xff] %vm439, -inf
          %441 = vst.msk [vmem:[#allocation2 + $0x8] sm:$0xff] %vm439, -inf
          %442 = vst.msk [vmem:[#allocation2 + $0x10] sm:$0xff] %vm439, -inf
          %443 = vst.msk [vmem:[#allocation2 + $0x18] sm:$0xff] %vm439, -inf
          %444 = vst.msk [vmem:[#allocation3] sm:$0xff] %vm439, 0.0
          %445 = vst.msk [vmem:[#allocation3 + $0x8] sm:$0xff] %vm439, 0.0
          %446 = vst.msk [vmem:[#allocation3 + $0x10] sm:$0xff] %vm439, 0.0
          %447 = vst.msk [vmem:[#allocation3 + $0x18] sm:$0xff] %vm439, 0.0
        $region48: #{_apply.2} parent=31 // pred_fallthru
          _
        %v448 = vld [vmem:[#allocation2] sm:$0xff]
        %v449 = vld [vmem:[#allocation2 + $0x8] sm:$0xff]
        %v450 = vld [vmem:[#allocation2 + $0x10] sm:$0xff]
        %v451 = vld [vmem:[#allocation2 + $0x18] sm:$0xff]
        %452 = vmax.xlane.f32.xlu0 %v413
        %v453 = vpop.xlane.xlu0 %452
        %454 = vmax.xlane.f32.xlu0 %v418
        %v455 = vpop.xlane.xlu0 %454
        %456 = vmax.xlane.f32.xlu0 %v423
        %v457 = vpop.xlane.xlu0 %456
        %458 = vmax.xlane.f32.xlu0 %v428
        %v459 = vpop.xlane.xlu0 %458
        %v460 = vmax.f32 %v448, %v453
        %v461 = vmax.f32 %v449, %v455
        %v462 = vmax.f32 %v450, %v457
        %v463 = vmax.f32 %v451, %v459
        %v464 = vld [vmem:[#allocation3] sm:$0xff]
        %v465 = vld [vmem:[#allocation3 + $0x8] sm:$0xff]
        %v466 = vld [vmem:[#allocation3 + $0x10] sm:$0xff]
        %v467 = vld [vmem:[#allocation3 + $0x18] sm:$0xff]
        %v468 = vsub.f32 %v448, %v460
        %v469 = vsub.f32 %v449, %v461
        %v470 = vsub.f32 %v450, %v462
        %v471 = vsub.f32 %v451, %v463
        %v472 = vmul.f32 %v468, 1.442695
        %v473 = vpow.pop %v472
        %v474 = vmul.f32 %v469, 1.442695
        %v475 = vpow.pop %v474
        %v476 = vmul.f32 %v470, 1.442695
        %v477 = vpow.pop %v476
        %v478 = vmul.f32 %v471, 1.442695
        %v479 = vpow.pop %v478
        %v480 = vmul.f32 %v464, %v473
        %v481 = vmul.f32 %v465, %v475
        %v482 = vmul.f32 %v466, %v477
        %v483 = vmul.f32 %v467, %v479
        %485 = vset.pattern.permute.xlu0 0
        %486 = vperm.xlu0 %485, %v460
        %v487 = vpop.permute.xlu0 %486
        %490 = vset.pattern.permute.xlu0 0
        %491 = vperm.xlu0 %490, %v461
        %v492 = vpop.permute.xlu0 %491
        %495 = vset.pattern.permute.xlu0 0
        %496 = vperm.xlu0 %495, %v462
        %v497 = vpop.permute.xlu0 %496
        %500 = vset.pattern.permute.xlu0 0
        %501 = vperm.xlu0 %500, %v463
        %v502 = vpop.permute.xlu0 %501
        %v504 = vsub.f32 %v413, %v487
        %v505 = vsub.f32 %v418, %v492
        %v506 = vsub.f32 %v423, %v497
        %v507 = vsub.f32 %v428, %v502
        %v508 = vmul.f32 %v504, 1.442695
        %v509 = vpow.pop %v508
        %v510 = vmul.f32 %v505, 1.442695
        %v511 = vpow.pop %v510
        %v512 = vmul.f32 %v506, 1.442695
        %v513 = vpow.pop %v512
        %v514 = vmul.f32 %v507, 1.442695
        %v515 = vpow.pop %v514
        %516 = vadd.xlane.f32.xlu0 %v509
        %v517 = vpop.xlane.xlu0 %516
        %518 = vadd.xlane.f32.xlu0 %v511
        %v519 = vpop.xlane.xlu0 %518
        %520 = vadd.xlane.f32.xlu0 %v513
        %v521 = vpop.xlane.xlu0 %520
        %522 = vadd.xlane.f32.xlu0 %v515
        %v523 = vpop.xlane.xlu0 %522
        %v524 = vadd.f32 %v480, %v517
        %v525 = vadd.f32 %v481, %v519
        %v526 = vadd.f32 %v482, %v521
        %v527 = vadd.f32 %v483, %v523
        %vm528 = vcmask 7168
        %529 = vst.msk [vmem:[#allocation3] sm:$0xff] %vm528, %v524
        %530 = vst.msk [vmem:[#allocation3 + $0x8] sm:$0xff] %vm528, %v525
        %531 = vst.msk [vmem:[#allocation3 + $0x10] sm:$0xff] %vm528, %v526
        %532 = vst.msk [vmem:[#allocation3 + $0x18] sm:$0xff] %vm528, %v527
        %533 = vst.msk [vmem:[#allocation2] sm:$0xff] %vm528, %v460
        %534 = vst.msk [vmem:[#allocation2 + $0x8] sm:$0xff] %vm528, %v461
        %535 = vst.msk [vmem:[#allocation2 + $0x10] sm:$0xff] %vm528, %v462
        %536 = vst.msk [vmem:[#allocation2 + $0x18] sm:$0xff] %vm528, %v463
        %p537 = scmp.eq.s32.totalorder %s33, 3
        // Predicated region
        $region49: #{_apply.2} parent=31 // pred_check
          %p538 = pneg %p537
        $region50: #{_apply.2} parent=31 // pred_check_branch
          %540 = sbr.rel (%p538) target = $region52
        $region51: #{_apply.2} parent=31 // pred_region
          %v541 = vld [vmem:[#allocation2] sm:$0xff]
          %v542 = vld [vmem:[#allocation2 + $0x8] sm:$0xff]
          %v543 = vld [vmem:[#allocation2 + $0x10] sm:$0xff]
          %v544 = vld [vmem:[#allocation2 + $0x18] sm:$0xff]
          %v545 = vld [vmem:[#allocation3] sm:$0xff]
          %v546 = vld [vmem:[#allocation3 + $0x8] sm:$0xff]
          %v547 = vld [vmem:[#allocation3 + $0x10] sm:$0xff]
          %v548 = vld [vmem:[#allocation3 + $0x18] sm:$0xff]
          %v549 = vlog2.pop %v545
          %v550 = vmul.f32 %v549, 0.6931472
          %v551 = vlog2.pop %v546
          %v552 = vmul.f32 %v551, 0.6931472
          %v553 = vlog2.pop %v547
          %v554 = vmul.f32 %v553, 0.6931472
          %v555 = vlog2.pop %v548
          %v556 = vmul.f32 %v555, 0.6931472
          %v557 = vadd.f32 %v541, %v550
          %v558 = vadd.f32 %v542, %v552
          %v559 = vadd.f32 %v543, %v554
          %v560 = vadd.f32 %v544, %v556
          %561 = vst.msk [vmem:[%s310] sm:$0xff] %vm528, %v557
          %562 = vst.msk [vmem:[%s310 + $0x8] sm:$0xff] %vm528, %v558
          %563 = vst.msk [vmem:[%s310 + $0x10] sm:$0xff] %vm528, %v559
          %564 = vst.msk [vmem:[%s310 + $0x18] sm:$0xff] %vm528, %v560
        $region52: #{_apply.2} parent=31 // pred_fallthru
          _
        %s565 = sand.u32 %s128, 1
        %s566 = scalar_lea.sflag [#allocation6], %s565
        %s567 = sand.u32 %s128, 1
        %s568 = smul.addr %s567, 32
        %s569 = scalar_lea.vmem [#allocation10], %s568
        %s570 = sand.u32 %s154, 1
        %s571 = scalar_lea.sflag [#allocation12], %s570
        %s572 = sand.u32 %s154, 1
        %s573 = smul.addr %s572, 32
        %s574 = scalar_lea.vmem [#allocation11], %s573
        // Predicated region
        $region53: #{_apply.2} parent=31 // pred_check
          %p575 = pneg %p138
        $region54: #{_apply.2} parent=31 // pred_check_branch
          %577 = sbr.rel (%p575) target = $region56
        $region55: #{_apply.2} parent=31 // pred_region
          %s578 = smul.u32 4, %s32
          %s580 = ssub.s32 512, 512
          %581 = vsyncadd %s566, %s580
          %s582 = smul.addr %s578, 4
          %s583 = sadd.s32 %s33, %s582
          %s584 = smul.addr %s583, 128
          %s585 = scalar_lea.hbm %s3, %s584
          %s586 = sshll.u32 %s569, 4
          %s587 = int_to_ptr.vmem [resolvable:$true] %s586
          %592 = dma.vmem_to_hbm [thread:$0]  %s587, 512, %s585, %s566, 128, 512, 8
        $region56: #{_apply.2} parent=31 // pred_fallthru
          _
        // Predicated region
        $region57: #{_apply.2} parent=31 // pred_check
          %p593 = pneg %p164
        $region58: #{_apply.2} parent=31 // pred_check_branch
          %595 = sbr.rel (%p593) target = $region60
        $region59: #{_apply.2} parent=31 // pred_region
          %s596 = smul.u32 4, %s32
          %s598 = ssub.s32 512, 512
          %599 = vsyncadd %s571, %s598
          %s600 = smul.addr %s596, 128
          %s601 = scalar_lea.hbm %s4, %s600
          %s602 = sshll.u32 %s574, 4
          %s603 = int_to_ptr.vmem [resolvable:$true] %s602
          %608 = dma.vmem_to_hbm [thread:$0]  %s603, 512, %s601, %s571, 128, 128, 8
        $region60: #{_apply.2} parent=31 // pred_fallthru
          _
      $region32: #{_apply.2} parent=5 // pred_fallthru
        _
      %p609 = scmp.le.s32.totalorder 2, %s23
      // Predicated region
      $region61: #{_apply.2} parent=5 // pred_check
        %p610 = pneg %p609
      $region62: #{_apply.2} parent=5 // pred_check_branch
        %612 = sbr.rel (%p610) target = $region64
      $region63: #{_apply.2} parent=5 // pred_region
        %s613 = ssub.s32 %s23, 2
        // Predicated region
        $region65: #{_apply.2} parent=63 // pred_check
          %p614 = pneg %p144
        $region66: #{_apply.2} parent=63 // pred_check_branch
          %616 = sbr.rel (%p614) target = $region68
        $region67: #{_apply.2} parent=63 // pred_region
          %s617 = sand.u32 %s129, 1
          %s618 = scalar_lea.sflag [#allocation6], %s617
          %s619 = sand.u32 %s129, 1
          %s620 = smul.addr %s619, 32
          %s621 = scalar_lea.vmem [#allocation10], %s620
          %622 = dma.done %s618, 512
        $region68: #{_apply.2} parent=63 // pred_fallthru
          _
        // Predicated region
        $region69: #{_apply.2} parent=63 // pred_check
          %p623 = pneg %p170
        $region70: #{_apply.2} parent=63 // pred_check_branch
          %625 = sbr.rel (%p623) target = $region72
        $region71: #{_apply.2} parent=63 // pred_region
          %s626 = sand.u32 %s155, 1
          %s627 = scalar_lea.sflag [#allocation12], %s626
          %s628 = sand.u32 %s155, 1
          %s629 = smul.addr %s628, 32
          %s630 = scalar_lea.vmem [#allocation11], %s629
          %631 = dma.done %s627, 512
        $region72: #{_apply.2} parent=63 // pred_fallthru
          _
      $region64: #{_apply.2} parent=5 // pred_fallthru
        _
    $region6: #{_apply.2} parent=1 // loop_footer
      %s27 = sadd.s32 1, %s23
    $region7: #{_apply.2} parent=1 // loop_footer_branch
      %22 = sbr.rel target = $region3
    $region8: #{_apply.2} parent=1 // loop_exit
      _
    %632 = vsyncpa [#allocation5], 1
    %s633 = scalar_lea.sflag [#allocation5], 1
    %634 = vsyncpa %s633, 1
    %635 = vsyncpa [#allocation8], 1
    %s636 = scalar_lea.sflag [#allocation8], 1
    %637 = vsyncpa %s636, 1
    %638 = vsyncpa [#allocation6], 1
    %s639 = scalar_lea.sflag [#allocation6], 1
    %640 = vsyncpa %s639, 1
    %641 = vsyncpa [#allocation12], 1
    %s642 = scalar_lea.sflag [#allocation12], 1
    %643 = vsyncpa %s642, 1

</llo_original>
